<compile_context>
chip_gen: v7x
topology: tpu7x:2x2x1
jax: 0.10.0
libtpu: 0.0.40
codegen_flags: <defaults>
</compile_context>

<pallas_src>
import functools

import jax
import jax.numpy as jnp
from jax import lax
from jax.experimental import pallas as pl
from jax.experimental.pallas import tpu as pltpu


def _round_up(x, m):
    return (x + m - 1) // m * m


def _embeddings_kernel(idw_ref, ids_ref, word_ref, stab_ref, g_ref, b_ref,
                       o_ref, gbuf_ref, sem_ref, *, eps, tm):
    base = pl.program_id(0) * tm

    # --- Word embeddings: data-dependent DMA row gather HBM -> VMEM scratch ---
    @pl.loop(0, tm)
    def _(r):
        row = idw_ref[base + r]                    # scalar read from SMEM
        pltpu.make_async_copy(word_ref.at[row], gbuf_ref.at[r],
                              sem_ref.at[0]).start()

    @pl.loop(0, tm)
    def _(r):
        # Same-shape descriptor; waits for one completed row copy each time.
        pltpu.make_async_copy(word_ref.at[0], gbuf_ref.at[r],
                              sem_ref.at[0]).wait()

    # --- Token-type + position lookup: one segment-local one-hot MXU matmul ---
    stot = stab_ref.shape[0]
    idt = ids_ref[:, 0:1]                          # token-type id        (tm, 1)
    idp = ids_ref[:, 1:2]                          # position id (+T off) (tm, 1)
    iota = lax.broadcasted_iota(jnp.int32, (tm, stot), 1)
    # Ranges are disjoint (tt in [0,T), pos in [T,T+P)) -> OR then one cast.
    onehot = jnp.logical_or(iota == idt, iota == idp).astype(stab_ref.dtype)
    small = jnp.dot(onehot, stab_ref[...], preferred_element_type=jnp.float32)

    x = gbuf_ref[...].astype(jnp.float32) + small

    # --- LayerNorm over hidden (lane) axis, one-pass statistics ---
    inv_h = 1.0 / x.shape[-1]
    s1 = jnp.sum(x, axis=-1, keepdims=True)
    s2 = jnp.sum(x * x, axis=-1, keepdims=True)
    mean = s1 * inv_h
    var = jnp.maximum(s2 * inv_h - mean * mean, 0.0)
    y = (x - mean) * lax.rsqrt(var + eps)
    y = y * g_ref[...].astype(jnp.float32) + b_ref[...].astype(jnp.float32)
    # TODO(synk): dropout omitted (inference / p=0 path); training mode would
    # need pltpu.prng_seed + pltpu.stateful_bernoulli with a per-tile seed.
    # TODO(synk): trace-label embeddings ('sine' / 'binary-learnable' / 'input')
    # are not fused; only the default trace_label_embedding_type='none' path.
    o_ref[...] = y.astype(o_ref.dtype)


def perfformer_embeddings(input_ids, word_emb, token_type_emb, pos_emb,
                          ln_gamma, ln_beta, *, pad_token_id,
                          token_type_ids=None, position_ids=None,
                          eps=1e-12, tile_rows=512):
    """input_ids: [B, S] int; tables: [*, H]; returns [B, S, H]."""
    B, S = input_ids.shape
    V, H = word_emb.shape
    T = token_type_emb.shape[0]
    P = pos_emb.shape[0]
    assert H % 128 == 0, "hidden_size must be lane-dense (multiple of 128)"
    # TODO(synk): on v6e/v7x an H that is a multiple of 256 uses the full MXU
    # width for the small one-hot matmul.

    input_ids = input_ids.astype(jnp.int32)
    if position_ids is None:
        mask = (input_ids != pad_token_id).astype(jnp.int32)
        position_ids = jnp.cumsum(mask, axis=1) * mask + pad_token_id
    if token_type_ids is None:
        token_type_ids = jnp.zeros((B, S), jnp.int32)

    # Clamp to valid ranges: an OOB word id must never be issued as a DMA, and
    # OOB position ids would otherwise silently produce zero rows (review note).
    word_ids = jnp.clip(input_ids, 0, V - 1)
    position_ids = jnp.clip(position_ids.astype(jnp.int32), 0, P - 1)
    token_type_ids = jnp.clip(token_type_ids.astype(jnp.int32), 0, T - 1)

    rows = B * S
    tm = _round_up(min(tile_rows, _round_up(rows, 8)), 8)
    rows_p = _round_up(rows, tm)
    grid = (rows_p // tm,)

    # Scalar-prefetch word ids (drive the per-row DMA gather from SMEM).
    # Padded rows gather row 0 (valid index) and are sliced off afterwards.
    idw = jnp.pad(word_ids.reshape(rows), (0, rows_p - rows))

    # Pack token-type + (offset) position ids into ONE (rows_p, 2) input.
    ids_small = jnp.stack(
        [token_type_ids.reshape(rows), position_ids.reshape(rows) + T], axis=1)
    ids_small = jnp.pad(ids_small, ((0, rows_p - rows), (0, 0)))

    # Small resident table: [token_type_emb; pos_emb], sublane-padded.
    stot = _round_up(T + P, 8)
    small_tab = jnp.concatenate([token_type_emb, pos_emb], axis=0)
    small_tab = jnp.pad(small_tab, ((0, stot - (T + P)), (0, 0)))

    g2d = ln_gamma.reshape(1, H)
    b2d = ln_beta.reshape(1, H)

    itemsize = jnp.dtype(word_emb.dtype).itemsize
    # VMEM budget: out + ids double buffers, small table + LN params
    # (pipeline double-buffers them even though grid-invariant), gather buf.
    need = (2 * tm * H * itemsize        # output double buffer
            + 2 * tm * 2 * 4             # packed ids double buffer
            + 2 * stot * H * itemsize    # small table
            + 2 * 2 * H * itemsize       # gamma + beta
            + tm * H * itemsize)         # gather scratch
    vmem_limit = int(min(max(2 * need, 16 * 1024 * 1024), 48 * 1024 * 1024))

    cost = pl.CostEstimate(
        flops=2 * rows_p * stot * H,
        transcendentals=rows_p,
        bytes_accessed=(rows_p * 4                 # word ids
                        + rows_p * 2 * 4           # packed ids
                        + rows_p * H * itemsize    # gathered word rows
                        + stot * H * itemsize
                        + 2 * H * itemsize
                        + rows_p * H * itemsize),  # output
    )

    out = pl.pallas_call(
        functools.partial(_embeddings_kernel, eps=eps, tm=tm),
        out_shape=jax.ShapeDtypeStruct((rows_p, H), word_emb.dtype),
        grid_spec=pltpu.PrefetchScalarGridSpec(
            num_scalar_prefetch=1,
            grid=grid,
            in_specs=[
                pl.BlockSpec((tm, 2), lambda i, idw: (i, 0)),    # packed tt/pos ids
                pl.BlockSpec(memory_space=pl.ANY),               # word table (HBM)
                pl.BlockSpec((stot, H), lambda i, idw: (0, 0)),  # small table (invariant)
                pl.BlockSpec((1, H), lambda i, idw: (0, 0)),     # LN gamma
                pl.BlockSpec((1, H), lambda i, idw: (0, 0)),     # LN beta
            ],
            out_specs=pl.BlockSpec((tm, H), lambda i, idw: (i, 0)),
            scratch_shapes=[
                pltpu.VMEM((tm, H), word_emb.dtype),             # gathered word rows
                pltpu.SemaphoreType.DMA((1,)),
            ]),
        compiler_params=pltpu.CompilerParams(
            dimension_semantics=("parallel",),
            vmem_limit_bytes=vmem_limit),
        cost_estimate=cost,
    )(idw, ids_small, word_emb, small_tab, g2d, b2d)

    return out[:rows].reshape(B, S, H)


def _reference(input_ids, word_emb, token_type_emb, pos_emb, ln_gamma, ln_beta,
               pad_token_id, eps):
    mask = (input_ids != pad_token_id).astype(jnp.int32)
    position_ids = jnp.cumsum(mask, axis=1) * mask + pad_token_id
    token_type_ids = jnp.zeros_like(input_ids)
    x = (jnp.take(word_emb, input_ids, axis=0)
         + jnp.take(token_type_emb, token_type_ids, axis=0)
         + jnp.take(pos_emb, position_ids, axis=0)).astype(jnp.float32)
    mean = jnp.mean(x, axis=-1, keepdims=True)
    var = jnp.mean((x - mean) ** 2, axis=-1, keepdims=True)
    y = (x - mean) / jnp.sqrt(var + eps) * ln_gamma + ln_beta
    return y.astype(word_emb.dtype)


if __name__ == "__main__":
    # Small config consistent with the module; hidden chosen lane-dense (128).
    batch, seq = 2, 8
    hidden_size = 128
    vocab_size = 96
    max_position_embeddings = 64
    type_vocab_size = 2
    pad_token_id = 1
    eps = 1e-12

    key = jax.random.PRNGKey(0)
    k_ids, k_w, k_t, k_p, k_g, k_b = jax.random.split(key, 6)

    input_ids = jax.random.randint(k_ids, (batch, seq), 0, vocab_size,
                                   dtype=jnp.int32)
    # Insert some padding tokens to exercise the position-id logic.
    input_ids = input_ids.at[0, -2:].set(pad_token_id)

    word_emb = 0.02 * jax.random.normal(k_w, (vocab_size, hidden_size),
                                        dtype=jnp.float32)
    word_emb = word_emb.at[pad_token_id].set(0.0)        # nn.Embedding padding_idx
    token_type_emb = 0.02 * jax.random.normal(
        k_t, (type_vocab_size, hidden_size), dtype=jnp.float32)
    pos_emb = 0.02 * jax.random.normal(
        k_p, (max_position_embeddings, hidden_size), dtype=jnp.float32)
    pos_emb = pos_emb.at[pad_token_id].set(0.0)          # padding_idx row
    ln_gamma = 1.0 + 0.01 * jax.random.normal(k_g, (hidden_size,),
                                              dtype=jnp.float32)
    ln_beta = 0.01 * jax.random.normal(k_b, (hidden_size,), dtype=jnp.float32)

    out = perfformer_embeddings(input_ids, word_emb, token_type_emb, pos_emb,
                                ln_gamma, ln_beta, pad_token_id=pad_token_id,
                                eps=eps)
    out = jax.block_until_ready(out)

    ref = _reference(input_ids, word_emb, token_type_emb, pos_emb,
                     ln_gamma, ln_beta, pad_token_id, eps)
    assert out.shape == (batch, seq, hidden_size)
    assert jnp.allclose(out, ref, atol=1e-4, rtol=1e-4), "mismatch vs reference"

    print("KERNEL_OK")
</pallas_src>

<mosaic_0001>
module attributes {stable_mosaic.version = 11 : i64} {
  func.func @_embeddings_kernel(%arg0: i32, %arg1: memref<16xi32, #tpu.memory_space<smem>>, %arg2: memref<16x2xi32, #tpu.memory_space<vmem>>, %arg3: memref<96x128xf32, #tpu.memory_space<any>>, %arg4: memref<72x128xf32, #tpu.memory_space<vmem>>, %arg5: memref<1x128xf32, #tpu.memory_space<vmem>>, %arg6: memref<1x128xf32, #tpu.memory_space<vmem>>, %arg7: memref<16x128xf32, #tpu.memory_space<vmem>>, %arg8: memref<16x128xf32, #tpu.memory_space<vmem>>, %arg9: memref<1x!tpu.dma_semaphore, #tpu.memory_space<semaphore_mem>>) attributes {dimension_semantics = [#tpu.dimension_semantics<parallel>], iteration_bounds = array<i64: 1>, scalar_prefetch = 1 : i64, scratch_operands = 2 : i64, tpu.core_type = #tpu.core_type<tc>, window_params = [{transform_indices = @transform_0, window_bounds = array<i64: 16, 2>}, {}, {pipeline_mode = #tpu.pipeline_mode<synchronous>, transform_indices = @transform_2, window_bounds = array<i64: 72, 128>}, {pipeline_mode = #tpu.pipeline_mode<synchronous>, transform_indices = @transform_3, window_bounds = array<i64: 1, 128>}, {pipeline_mode = #tpu.pipeline_mode<synchronous>, transform_indices = @transform_4, window_bounds = array<i64: 1, 128>}, {transform_indices = @transform_5, window_bounds = array<i64: 16, 128>}]} {
    %c16_i32 = arith.constant 16 : i32
    %0 = arith.muli %arg0, %c16_i32 : i32
    %c0_i32 = arith.constant 0 : i32
    %c16_i32_0 = arith.constant 16 : i32
    %1 = arith.addi %c0_i32, %c16_i32_0 : i32
    %c1_i32 = arith.constant 1 : i32
    scf.for %arg10 = %c0_i32 to %1 step %c1_i32  : i32 {
      %c1_i32_24 = arith.constant 1 : i32
      %44 = arith.muli %arg10, %c1_i32_24 : i32
      %c0_i32_25 = arith.constant 0 : i32
      %45 = arith.addi %c0_i32_25, %44 : i32
      %46 = arith.addi %0, %45 : i32
      %47 = arith.index_cast %46 : i32 to index
      %48 = memref.load %arg1[%47] : memref<16xi32, #tpu.memory_space<smem>>
      %c0_i32_26 = arith.constant 0 : i32
      %c0_i32_27 = arith.constant 0 : i32
      %49 = tpu.memref_slice %arg3[%48, %c0_i32_27] : memref<96x128xf32, #tpu.memory_space<any>> -> memref<1x128xf32, #tpu.memory_space<any>>
      %50 = tpu.memref_squeeze %49 : memref<1x128xf32, #tpu.memory_space<any>> -> memref<128xf32, #tpu.memory_space<any>>
      %c0_i32_28 = arith.constant 0 : i32
      %51 = tpu.memref_slice %arg8[%45, %c0_i32_28] : memref<16x128xf32, #tpu.memory_space<vmem>> -> memref<1x128xf32, #tpu.memory_space<vmem>>
      %52 = tpu.memref_squeeze %51 : memref<1x128xf32, #tpu.memory_space<vmem>> -> memref<128xf32, #tpu.memory_space<vmem>>
      %53 = tpu.memref_slice %arg9[%c0_i32_26] : memref<1x!tpu.dma_semaphore, #tpu.memory_space<semaphore_mem>> -> memref<1x!tpu.dma_semaphore, #tpu.memory_space<semaphore_mem>>
      %54 = tpu.memref_squeeze %53 : memref<1x!tpu.dma_semaphore, #tpu.memory_space<semaphore_mem>> -> memref<!tpu.dma_semaphore, #tpu.memory_space<semaphore_mem>>
      tpu.enqueue_dma source(%50 : memref<128xf32, #tpu.memory_space<any>>) target(%52 : memref<128xf32, #tpu.memory_space<vmem>>) target_semaphore(%54 : memref<!tpu.dma_semaphore, #tpu.memory_space<semaphore_mem>>)
    }
    %c16_i32_1 = arith.constant 16 : i32
    %c0_i32_2 = arith.constant 0 : i32
    %c16_i32_3 = arith.constant 16 : i32
    %2 = arith.addi %c0_i32_2, %c16_i32_3 : i32
    %c1_i32_4 = arith.constant 1 : i32
    scf.for %arg10 = %c0_i32_2 to %2 step %c1_i32_4  : i32 {
      %c1_i32_24 = arith.constant 1 : i32
      %44 = arith.muli %arg10, %c1_i32_24 : i32
      %c0_i32_25 = arith.constant 0 : i32
      %45 = arith.addi %c0_i32_25, %44 : i32
      %c0_i32_26 = arith.constant 0 : i32
      %c0_i32_27 = arith.constant 0 : i32
      %c0_i32_28 = arith.constant 0 : i32
      %46 = tpu.memref_slice %arg3[%c0_i32_26, %c0_i32_28] : memref<96x128xf32, #tpu.memory_space<any>> -> memref<1x128xf32, #tpu.memory_space<any>>
      %47 = tpu.memref_squeeze %46 : memref<1x128xf32, #tpu.memory_space<any>> -> memref<128xf32, #tpu.memory_space<any>>
      %c0_i32_29 = arith.constant 0 : i32
      %48 = tpu.memref_slice %arg8[%45, %c0_i32_29] : memref<16x128xf32, #tpu.memory_space<vmem>> -> memref<1x128xf32, #tpu.memory_space<vmem>>
      %49 = tpu.memref_squeeze %48 : memref<1x128xf32, #tpu.memory_space<vmem>> -> memref<128xf32, #tpu.memory_space<vmem>>
      %50 = tpu.memref_slice %arg9[%c0_i32_27] : memref<1x!tpu.dma_semaphore, #tpu.memory_space<semaphore_mem>> -> memref<1x!tpu.dma_semaphore, #tpu.memory_space<semaphore_mem>>
      %51 = tpu.memref_squeeze %50 : memref<1x!tpu.dma_semaphore, #tpu.memory_space<semaphore_mem>> -> memref<!tpu.dma_semaphore, #tpu.memory_space<semaphore_mem>>
      tpu.wait_dma2 semaphore(%51 : memref<!tpu.dma_semaphore, #tpu.memory_space<semaphore_mem>>) src(%47 : memref<128xf32, #tpu.memory_space<any>>) dst(%49 : memref<128xf32, #tpu.memory_space<vmem>>)
    }
    %c16_i32_5 = arith.constant 16 : i32
    %c0 = arith.constant 0 : index
    %c0_6 = arith.constant 0 : index
    %3 = vector.load %arg2[%c0, %c0_6] : memref<16x2xi32, #tpu.memory_space<vmem>>, vector<16x1xi32>
    %c0_7 = arith.constant 0 : index
    %c1 = arith.constant 1 : index
    %4 = vector.load %arg2[%c0_7, %c1] : memref<16x2xi32, #tpu.memory_space<vmem>>, vector<16x1xi32>
    %5 = tpu.iota {dimensions = array<i32: 1>} : vector<16x72xi32>
    %6 = vector.broadcast %3 : vector<16x1xi32> to vector<16x72xi32>
    %7 = arith.cmpi eq, %5, %6 : vector<16x72xi32>
    %8 = vector.broadcast %4 : vector<16x1xi32> to vector<16x72xi32>
    %9 = arith.cmpi eq, %5, %8 : vector<16x72xi32>
    %10 = arith.ori %7, %9 : vector<16x72xi1>
    %11 = arith.extui %10 : vector<16x72xi1> to vector<16x72xi32>
    %12 = arith.sitofp %11 : vector<16x72xi32> to vector<16x72xf32>
    %c0_8 = arith.constant 0 : index
    %c0_9 = arith.constant 0 : index
    %13 = vector.load %arg4[%c0_8, %c0_9] : memref<72x128xf32, #tpu.memory_space<vmem>>, vector<72x128xf32>
    %cst = arith.constant dense<0.000000e+00> : vector<16x128xf32>
    %14 = tpu.matmul %12, %13, %cst {dimension_numbers = #tpu.dot_dimension_numbers<[1], [0], [0], [1], [0, 0, 1, 1], [], []>} : vector<16x72xf32>, vector<72x128xf32>, vector<16x128xf32> -> vector<16x128xf32>
    %c0_10 = arith.constant 0 : index
    %c0_11 = arith.constant 0 : index
    %15 = vector.load %arg8[%c0_10, %c0_11] : memref<16x128xf32, #tpu.memory_space<vmem>>, vector<16x128xf32>
    %16 = arith.addf %15, %14 : vector<16x128xf32>
    %cst_12 = arith.constant dense<0.000000e+00> : vector<16xf32>
    %17 = vector.multi_reduction <add>, %16, %cst_12 [1] : vector<16x128xf32> to vector<16xf32>
    %18 = vector.shape_cast %17 : vector<16xf32> to vector<16x1xf32>
    %19 = arith.mulf %16, %16 : vector<16x128xf32>
    %cst_13 = arith.constant dense<0.000000e+00> : vector<16xf32>
    %20 = vector.multi_reduction <add>, %19, %cst_13 [1] : vector<16x128xf32> to vector<16xf32>
    %21 = vector.shape_cast %20 : vector<16xf32> to vector<16x1xf32>
    %cst_14 = arith.constant 7.812500e-03 : f32
    %22 = vector.broadcast %cst_14 : f32 to vector<16x1xf32>
    %23 = arith.mulf %18, %22 : vector<16x1xf32>
    %cst_15 = arith.constant 7.812500e-03 : f32
    %24 = vector.broadcast %cst_15 : f32 to vector<16x1xf32>
    %25 = arith.mulf %21, %24 : vector<16x1xf32>
    %26 = arith.mulf %23, %23 : vector<16x1xf32>
    %27 = arith.subf %25, %26 : vector<16x1xf32>
    %cst_16 = arith.constant 0.000000e+00 : f32
    %28 = vector.broadcast %cst_16 : f32 to vector<16x1xf32>
    %29 = arith.maximumf %27, %28 : vector<16x1xf32>
    %30 = vector.broadcast %23 : vector<16x1xf32> to vector<16x128xf32>
    %31 = arith.subf %16, %30 : vector<16x128xf32>
    %cst_17 = arith.constant 9.99999996E-13 : f32
    %32 = vector.broadcast %cst_17 : f32 to vector<16x1xf32>
    %33 = arith.addf %29, %32 : vector<16x1xf32>
    %34 = math.rsqrt %33 : vector<16x1xf32>
    %35 = vector.broadcast %34 : vector<16x1xf32> to vector<16x128xf32>
    %36 = arith.mulf %31, %35 : vector<16x128xf32>
    %c0_18 = arith.constant 0 : index
    %c0_19 = arith.constant 0 : index
    %37 = vector.load %arg5[%c0_18, %c0_19] : memref<1x128xf32, #tpu.memory_space<vmem>>, vector<1x128xf32>
    %38 = vector.broadcast %37 : vector<1x128xf32> to vector<16x128xf32>
    %39 = arith.mulf %36, %38 : vector<16x128xf32>
    %c0_20 = arith.constant 0 : index
    %c0_21 = arith.constant 0 : index
    %40 = vector.load %arg6[%c0_20, %c0_21] : memref<1x128xf32, #tpu.memory_space<vmem>>, vector<1x128xf32>
    %41 = vector.broadcast %40 : vector<1x128xf32> to vector<16x128xf32>
    %42 = arith.addf %39, %41 : vector<16x128xf32>
    %c0_22 = arith.constant 0 : index
    %c0_23 = arith.constant 0 : index
    %43 = vector.load %arg7[%c0_22, %c0_23] : memref<16x128xf32, #tpu.memory_space<vmem>>, vector<16x128xf32>
    tpu.vector_store %arg7[%c0_22, %c0_23], %42 {strides = array<i32>} : memref<16x128xf32, #tpu.memory_space<vmem>>, vector<16x128xf32>,
    return
  }
  func.func @transform_0(%arg0: i32, %arg1: memref<16xi32, #tpu.memory_space<smem>>) -> (i32, i32) {
    %c0_i32 = arith.constant 0 : i32
    %c0_i32_0 = arith.constant 0 : i32
    return %arg0, %c0_i32 : i32, i32
  }
  func.func @transform_2(%arg0: i32, %arg1: memref<16xi32, #tpu.memory_space<smem>>) -> (i32, i32) {
    %c0_i32 = arith.constant 0 : i32
    %c0_i32_0 = arith.constant 0 : i32
    %c0_i32_1 = arith.constant 0 : i32
    return %c0_i32, %c0_i32_0 : i32, i32
  }
  func.func @transform_3(%arg0: i32, %arg1: memref<16xi32, #tpu.memory_space<smem>>) -> (i32, i32) {
    %c0_i32 = arith.constant 0 : i32
    %c0_i32_0 = arith.constant 0 : i32
    %c0_i32_1 = arith.constant 0 : i32
    return %c0_i32, %c0_i32_0 : i32, i32
  }
  func.func @transform_4(%arg0: i32, %arg1: memref<16xi32, #tpu.memory_space<smem>>) -> (i32, i32) {
    %c0_i32 = arith.constant 0 : i32
    %c0_i32_0 = arith.constant 0 : i32
    %c0_i32_1 = arith.constant 0 : i32
    return %c0_i32, %c0_i32_0 : i32, i32
  }
  func.func @transform_5(%arg0: i32, %arg1: memref<16xi32, #tpu.memory_space<smem>>) -> (i32, i32) {
    %c0_i32 = arith.constant 0 : i32
    %c0_i32_0 = arith.constant 0 : i32
    return %arg0, %c0_i32 : i32, i32
  }
}

</mosaic_0001>

<llo_original>
// kernel: tpu_custom_call.1
$region0: #{tpu_custom_call.1}
  #allocation0 [shape = 'u32[]', space=smem, size = 0x4, offset = 0x4, fixed_abs, tag = 'smem constant byte address 0x4 - core index']
  #allocation1 [shape = 'u32[144,128]{1,0:T(1,128)}', space=vmem, size = 0x12000, scoped, tag = 'internal scratch']
  #allocation2 [shape = 'f32[16,128]{1,0:T(8,128)}', space=vmem, size = 0x2000, scoped, tag = 'scratch operand']
  #allocation3 [shape = 's32[1]{0}', space=sflag, size = 0x4, scoped, tag = 'scratch operand']
  #allocation4 [shape = 's32[1]{0}', space=sflag, size = 0x4, scoped, tag = 'scoped memory for tpu_custom_call.1']
  #allocation5 [shape = 'u8[512]{0}', space=smem, size = 0x200, scoped, tag = 'prefetched SMEM operand 0']
  #allocation10 [shape = 's32[]', space=sflag, size = 0x4, offset = 0, fixed_abs, tag = 'sflag constant byte address 0x0 - dummy sync flag']
  #allocation11 [shape = 's32[]', space=sflag, size = 0x4, offset = 0, fixed_abs, tag = 'sflag constant byte address 0x0 - dummy sync flag']
  #allocation12 [shape = 'u32[]', space=smem, size = 0x4, offset = 0x44, fixed_abs, tag = 'smem constant byte address 0x44 - assertion arg 0']
  #allocation13 [shape = 'u32[]', space=smem, size = 0x4, offset = 0x48, fixed_abs, tag = 'smem constant byte address 0x48 - assertion arg 1']
  %s0 = inlined_call_operand.vmem [shape: s32[16], index: 0, kind: input, shape index: {}]
  %s1 = inlined_call_operand.vmem [shape: s32[16,2], index: 1, kind: input, shape index: {}]
  %s2 = inlined_call_operand.hbm [shape: f32[96,128], index: 2, kind: input, shape index: {}]
  %s3 = inlined_call_operand.hbm [shape: f32[72,128], index: 3, kind: input, shape index: {}]
  %s4 = inlined_call_operand.vmem [shape: f32[1,128], index: 4, kind: input, shape index: {}]
  %s5 = inlined_call_operand.vmem [shape: f32[1,128], index: 5, kind: input, shape index: {}]
  %s6 = inlined_call_operand.hbm [shape: f32[16,128], index: 6, kind: output, shape index: {}]
  %s7 = sld [smem:[#allocation0]]
  $region48: #{tpu_custom_call.1} parent=0
    _
  %s9 = ssub.s32 1, %s7
  %s10 = scalar_select 0, %s9, %s7
  %s11 = sshll.u32 %s0, 4
  %s12 = int_to_ptr.vmem [resolvable:$true] %s11
  %14 = dma.vmem_to_smem %s12, 16, [#allocation5], [#allocation4]
  %15 = dma.done [#allocation4], 16
  %16 = sfence
  $region1: #{tpu_custom_call.1} parent=0
    #allocation6 [shape = 'u8[36864]{0}', space=vmem, size = 0x9000, scoped, tag = 'input window, operand 3, single buffered']
    #allocation7 [shape = 's32[1]{0}', space=sflag, size = 0x4, scoped, tag = 'scoped memory for tpu_custom_call.1']
    #allocation8 [shape = 's32[1]{0}', space=sflag, size = 0x4, scoped, tag = 'scoped memory for tpu_custom_call.1']
    #allocation9 [shape = 'u8[8192]{0}', space=vmem, size = 0x2000, scoped, tag = 'output window, operand 0, single buffered']
    %17 = vsyncpa [#allocation7], 0
    %18 = vsyncpa [#allocation8], 0
    // Predicated region
    $region2: #{tpu_custom_call.1} parent=1 // pred_check
      _
    $region3: #{tpu_custom_call.1} parent=1 // pred_check_branch
      %20 = sbr.rel (0) target = $region5
    $region4: #{tpu_custom_call.1} parent=1 // pred_region
      _
    $region5: #{tpu_custom_call.1} parent=1 // pred_fallthru
      _
    // Predicated region
    $region6: #{tpu_custom_call.1} parent=1 // pred_check
      _
    $region7: #{tpu_custom_call.1} parent=1 // pred_check_branch
      %22 = sbr.rel (0) target = $region9
    $region8: #{tpu_custom_call.1} parent=1 // pred_region
      %s24 = ssub.s32 1152, 1152
      %25 = vsyncadd [#allocation7], %s24
      %s26 = sshll.u32 [#allocation6], 4
      %s27 = int_to_ptr.vmem [resolvable:$true] %s26
      %32 = dma.hbm_to_vmem [thread:$0]  %s3, 1152, %s27, [#allocation7], 128, 128, 8
    $region9: #{tpu_custom_call.1} parent=1 // pred_fallthru
      _
    // Predicated region
    $region10: #{tpu_custom_call.1} parent=1 // pred_check
      _
    $region11: #{tpu_custom_call.1} parent=1 // pred_check_branch
      %34 = sbr.rel (0) target = $region13
    $region12: #{tpu_custom_call.1} parent=1 // pred_region
      _
    $region13: #{tpu_custom_call.1} parent=1 // pred_fallthru
      _
    // Predicated region
    $region14: #{tpu_custom_call.1} parent=1 // pred_check
      _
    $region15: #{tpu_custom_call.1} parent=1 // pred_check_branch
      %36 = sbr.rel (0) target = $region17
    $region16: #{tpu_custom_call.1} parent=1 // pred_region
      _
    $region17: #{tpu_custom_call.1} parent=1 // pred_fallthru
      _
    // Predicated region
    $region18: #{tpu_custom_call.1} parent=1 // pred_check
      _
    $region19: #{tpu_custom_call.1} parent=1 // pred_check_branch
      %38 = sbr.rel (0) target = $region21
    $region20: #{tpu_custom_call.1} parent=1 // pred_region
      %39 = dma.done [#allocation7], 1152
    $region21: #{tpu_custom_call.1} parent=1 // pred_fallthru
      _
    %s40 = smul.u32 0, 16
    loop: start=0, step=1, limit=16
    $region22: #{tpu_custom_call.1} parent=1 // loop_pre_header
      _
    $region23: #{tpu_custom_call.1} parent=1 // loop_header
      %s42 = sphi 0, %s46
      %p43 = scmp.ge.s32.totalorder %s42, 16
    $region24: #{tpu_custom_call.1} parent=1 // loop_header_branch
      %45 = sbr.rel (%p43) target = $region28
    $region25: #{tpu_custom_call.1} parent=1 // loop_body
      %s47 = sadd.s32 %s40, %s42
      %s48 = sld [smem:[#allocation5 + %s47]]
      %s49 = smul.addr %s48, 16
      %s50 = scalar_lea.hbm %s2, %s49
      %s51 = scalar_lea.vmem [#allocation2], %s42
      // Predicated region
      $region29: #{tpu_custom_call.1} parent=25 // pred_check
        _
      $region30: #{tpu_custom_call.1} parent=25 // pred_check_branch
        %53 = sbr.rel target = $region32
      $region31: #{tpu_custom_call.1} parent=25 // pred_region
        %54 = sst [smem:[#allocation12]] [#allocation11]
        %55 = sst [smem:[#allocation13]] [#allocation10]
      $region32: #{tpu_custom_call.1} parent=25 // pred_fallthru
        _
      %57 = shalt.err (0)
      %s59 = sshll.u32 %s51, 4
      %s60 = int_to_ptr.vmem [resolvable:$true] %s59
      %62 = dma.hbm_to_vmem [thread:$0]  %s50, 16, %s60, [#allocation3]
    $region26: #{tpu_custom_call.1} parent=1 // loop_footer
      %s46 = sadd.s32 1, %s42
    $region27: #{tpu_custom_call.1} parent=1 // loop_footer_branch
      %41 = sbr.rel target = $region23
    $region28: #{tpu_custom_call.1} parent=1 // loop_exit
      _
    loop: start=0, step=1, limit=16
    $region33: #{tpu_custom_call.1} parent=1 // loop_pre_header
      _
    $region34: #{tpu_custom_call.1} parent=1 // loop_header
      %s64 = sphi 0, %s68
      %p65 = scmp.ge.s32.totalorder %s64, 16
    $region35: #{tpu_custom_call.1} parent=1 // loop_header_branch
      %67 = sbr.rel (%p65) target = $region39
    $region36: #{tpu_custom_call.1} parent=1 // loop_body
      %70 = dma.done [#allocation3], 16
    $region37: #{tpu_custom_call.1} parent=1 // loop_footer
      %s68 = sadd.s32 1, %s64
    $region38: #{tpu_custom_call.1} parent=1 // loop_footer_branch
      %63 = sbr.rel target = $region34
    $region39: #{tpu_custom_call.1} parent=1 // loop_exit
      _
    %v71 = vld [vmem:[%s1] sm:$0xff]
    %v72 = vld [vmem:[%s1 + $0x8] sm:$0xff]
    %v73 = vlaneseq
    %v74 = vand.u32 %v73, 127
    %75 = vset.pattern.permute.xlu0 0
    %76 = vperm.xlu0 %75, %v71
    %v77 = vpop.permute.xlu0 %76
    %78 = vset.pattern.permute.xlu0 0
    %79 = vperm.xlu0 %78, %v72
    %v80 = vpop.permute.xlu0 %79
    %vm81 = vcmp.eq.s32.totalorder %v74, %v77
    %vm82 = vcmp.eq.s32.totalorder %v74, %v80
    %83 = vset.pattern.permute.xlu0 1
    %84 = vperm.xlu0 %83, %v71
    %v85 = vpop.permute.xlu0 %84
    %86 = vset.pattern.permute.xlu0 1
    %87 = vperm.xlu0 %86, %v72
    %v88 = vpop.permute.xlu0 %87
    %vm89 = vcmp.eq.s32.totalorder %v74, %v85
    %vm90 = vcmp.eq.s32.totalorder %v74, %v88
    %vm91 = vmor %vm81, %vm89
    %vm92 = vmor %vm82, %vm90
    %v93 = vsel %vm91, 1, 0
    %v94 = vsel %vm92, 1, 0
    %v95 = vcvt.s32.f32 %v93
    %v96 = vcvt.s32.f32 %v94
    %v97 = vld [vmem:[#allocation6] sm:$0xff]
    %v98 = vld [vmem:[#allocation6 + $0x8] sm:$0xff]
    %v99 = vld [vmem:[#allocation6 + $0x10] sm:$0xff]
    %v100 = vld [vmem:[#allocation6 + $0x18] sm:$0xff]
    %v101 = vld [vmem:[#allocation6 + $0x20] sm:$0xff]
    %v102 = vld [vmem:[#allocation6 + $0x28] sm:$0xff]
    %v103 = vld [vmem:[#allocation6 + $0x30] sm:$0xff]
    %v104 = vld [vmem:[#allocation6 + $0x38] sm:$0xff]
    %v105 = vld [vmem:[#allocation6 + $0x40] sm:$0xff]
    %vm106 = vcmask 588800
    %v108 = vsel %vm106, %v95, 0
    %v111 = vsel %vm106, %v96, 0
    %113 = vmatprep.subr.mxu0 0.0
    %114 = vmatpush1.msra.mxu0 %v97
    %115 = vmatprep.subr.mxu0 0.0
    %116 = vmatpush1.msra.mxu0 %v98
    %117 = vmatprep.subr.mxu0 0.0
    %118 = vmatpush1.msra.mxu0 %v99
    %119 = vmatprep.subr.mxu0 0.0
    %120 = vmatpush1.msra.mxu0 %v100
    %121 = vmatprep.subr.mxu0 0.0
    %122 = vmatpush1.msra.mxu0 %v101
    %123 = vmatprep.subr.mxu0 0.0
    %124 = vmatpush1.msra.mxu0 %v102
    %125 = vmatprep.subr.mxu0 0.0
    %126 = vmatpush1.msra.mxu0 %v103
    %127 = vmatprep.subr.mxu0 0.0
    %128 = vmatpush1.msra.mxu0 %v104
    %129 = vmatprep.subr.mxu0 0.0
    %130 = vmatpush1.msra.mxu0 %v105
    %131 = vmatprep.subr.mxu0 0.0
    %132 = vmatpush1.msra.mxu0 0.0
    %133 = vmatprep.subr.mxu0 0.0
    %134 = vmatpush1.msra.mxu0 0.0
    %135 = vmatprep.subr.mxu0 0.0
    %136 = vmatpush1.msra.mxu0 0.0
    %137 = vmatprep.subr.mxu0 0.0
    %138 = vmatpush1.msra.mxu0 0.0
    %139 = vmatprep.subr.mxu0 0.0
    %140 = vmatpush1.msra.mxu0 0.0
    %141 = vmatprep.subr.mxu0 0.0
    %142 = vmatpush1.msra.mxu0 0.0
    %143 = vmatprep.subr.mxu0 0.0
    %144 = vmatpush1.msra.mxu0 0.0
    %145 = vmatprep.subr.mxu0 0.0
    %146 = vmatpush1.msra.mxu0 0.0
    %147 = vmatprep.subr.mxu0 0.0
    %148 = vmatpush1.msra.mxu0 0.0
    %149 = vmatprep.subr.mxu0 0.0
    %150 = vmatpush1.msra.mxu0 0.0
    %151 = vmatprep.subr.mxu0 0.0
    %152 = vmatpush1.msra.mxu0 0.0
    %153 = vmatprep.subr.mxu0 0.0
    %154 = vmatpush1.msra.mxu0 0.0
    %155 = vmatprep.subr.mxu0 0.0
    %156 = vmatpush1.msra.mxu0 0.0
    %157 = vmatprep.subr.mxu0 0.0
    %158 = vmatpush1.msra.mxu0 0.0
    %159 = vmatprep.subr.mxu0 0.0
    %160 = vmatpush1.msra.mxu0 0.0
    %161 = vmatprep.subr.mxu0 0.0
    %162 = vmatpush1.msra.mxu0 0.0
    %163 = vmatprep.subr.mxu0 0.0
    %164 = vmatpush1.msra.mxu0 0.0
    %165 = vmatprep.subr.mxu0 0.0
    %166 = vmatpush1.msra.mxu0 0.0
    %167 = vmatprep.subr.mxu0 0.0
    %168 = vmatpush1.msra.mxu0 0.0
    %169 = vmatprep.subr.mxu0 0.0
    %170 = vmatpush1.msra.mxu0 0.0
    %171 = vmatprep.subr.mxu0 0.0
    %172 = vmatpush1.msra.mxu0 0.0
    %173 = vmatprep.subr.mxu0 0.0
    %174 = vmatpush1.msra.mxu0 0.0
    %175 = vmatprep.subr.mxu0 0.0
    %176 = vmatpush1.msra.mxu0 0.0
    %177 = vmatprep.mubr.f32.mxu0 0.0
    %178 = vmatmul.mubr.f32.gmra.mrb[0].mxu0 %v108
    %v179 = vpop.f32.mrb[0].mxu0
    %v180 = vadd.f32 0.0, %v179
    %v181 = vpop.f32.mrb[0].mxu0
    %182 = vmatprep.mubr.f32.mxu0 0.0
    %183 = vmatmul.mubr.f32.gmra.mrb[0].mxu0 %v111
    %v184 = vpop.f32.mrb[0].mxu0
    %v185 = vadd.f32 0.0, %v184
    %v186 = vpop.f32.mrb[0].mxu0
    %187 = vdwg.mxu0
    %v188 = vld [vmem:[#allocation2] sm:$0xff]
    %v189 = vld [vmem:[#allocation2 + $0x8] sm:$0xff]
    %v190 = vadd.f32 %v188, %v180
    %v191 = vadd.f32 %v189, %v185
    %192 = vadd.xlane.f32.xlu0 %v190
    %v193 = vpop.xlane.xlu0 %192
    %194 = vadd.xlane.f32.xlu0 %v191
    %v195 = vpop.xlane.xlu0 %194
    %v196 = vmul.f32 %v190, %v190
    %v197 = vmul.f32 %v191, %v191
    %198 = vadd.xlane.f32.xlu0 %v196
    %v199 = vpop.xlane.xlu0 %198
    %200 = vadd.xlane.f32.xlu0 %v197
    %v201 = vpop.xlane.xlu0 %200
    %v202 = vmul.f32 %v193, 0.0078125
    %v203 = vmul.f32 %v195, 0.0078125
    %v204 = vmul.f32 %v199, 0.0078125
    %v205 = vmul.f32 %v201, 0.0078125
    %v206 = vmul.f32 %v202, %v202
    %v207 = vmul.f32 %v203, %v203
    %v208 = vsub.f32 %v204, %v206
    %v209 = vsub.f32 %v205, %v207
    %v210 = vmax.f32 %v208, 0.0
    %v211 = vmax.f32 %v209, 0.0
    %v212 = vsub.f32 %v190, %v202
    %v213 = vsub.f32 %v191, %v203
    %v214 = vadd.f32 %v210, 1e-12
    %v215 = vadd.f32 %v211, 1e-12
    %v216 = vrsqrt.pop %v214
    %v217 = vrsqrt.pop %v215
    %v218 = vmul.f32 %v212, %v216
    %v219 = vmul.f32 %v213, %v217
    %v220 = vld [vmem:[%s4] sm:$0x1]
    %v222 = vlaneseq
    %v223 = vshrl.u32 %v222, 7
    %v224 = vsub.s32 0, %v223
    %v225 = vrot.slane %v220, %v224
    %v227 = vmul.f32 %v218, %v225
    %v228 = vmul.f32 %v219, %v225
    %v229 = vld [vmem:[%s5] sm:$0x1]
    %v231 = vlaneseq
    %v232 = vshrl.u32 %v231, 7
    %v233 = vsub.s32 0, %v232
    %v234 = vrot.slane %v229, %v233
    %v236 = vadd.f32 %v227, %v234
    %v237 = vadd.f32 %v228, %v234
    %238 = vst [vmem:[#allocation9] sm:$0xff] %v236
    %239 = vst [vmem:[#allocation9 + $0x8] sm:$0xff] %v237
    // Predicated region
    $region40: #{tpu_custom_call.1} parent=1 // pred_check
      _
    $region41: #{tpu_custom_call.1} parent=1 // pred_check_branch
      %241 = sbr.rel (0) target = $region43
    $region42: #{tpu_custom_call.1} parent=1 // pred_region
      %s243 = ssub.s32 256, 256
      %244 = vsyncadd [#allocation8], %s243
      %s245 = sshll.u32 [#allocation9], 4
      %s246 = int_to_ptr.vmem [resolvable:$true] %s245
      %251 = dma.vmem_to_hbm [thread:$0]  %s246, 256, %s6, [#allocation8], 128, 128, 8
    $region43: #{tpu_custom_call.1} parent=1 // pred_fallthru
      _
    // Predicated region
    $region44: #{tpu_custom_call.1} parent=1 // pred_check
      _
    $region45: #{tpu_custom_call.1} parent=1 // pred_check_branch
      %253 = sbr.rel (0) target = $region47
    $region46: #{tpu_custom_call.1} parent=1 // pred_region
      %254 = dma.done [#allocation8], 256
    $region47: #{tpu_custom_call.1} parent=1 // pred_fallthru
      _
    %255 = vsyncpa [#allocation7], 1
    %256 = vsyncpa [#allocation8], 1
  %257 = vsyncmov [#allocation3]
  %s258 = vpop.sfrf %257
  %p259 = scmp.eq.s32.totalorder %s258, 0
  %p260 = pneg %p259
  %262 = shalt.err (%p260)

</llo_original>
